<compile_context>
chip_gen: v5e
topology: v5e:2x2
jax: 0.10.0
libtpu: 0.0.40
codegen_flags: <defaults>
</compile_context>

<pallas_src>
import jax
import jax.numpy as jnp
from jax import lax
from jax.experimental import pallas as pl
from jax.experimental.pallas import tpu as pltpu


# ---------------------------------------------------------------------------
# BlockSpec helpers
# ---------------------------------------------------------------------------
def _full0(shape):
    # whole-array VMEM block for a grid-less pallas_call
    return pl.BlockSpec(shape, lambda: (0,) * len(shape))


def _full1(shape):
    # whole-array VMEM block, constant across a 1-D grid (fetched once)
    return pl.BlockSpec(shape, lambda t: (0,) * len(shape))


def _smem_scalar0():
    return pl.BlockSpec((1, 1), lambda: (0, 0),
                        memory_space=pltpu.MemorySpace.SMEM)


def _smem_scalar1():
    return pl.BlockSpec((1, 1), lambda t: (0, 0),
                        memory_space=pltpu.MemorySpace.SMEM)


# ---------------------------------------------------------------------------
# Shared in-kernel math
# ---------------------------------------------------------------------------
def _cell_math(x, a, uww, uwb, vw, vb):
    """th = tanh([x|a] @ UWw + UWb) ; pre = th @ Vw + Vb  (single U/W MXU pass)."""
    xa = jnp.concatenate([x, a], axis=-1)                       # (B, E+H)
    th = jnp.tanh(jnp.dot(xa, uww, preferred_element_type=jnp.float32) + uwb)
    pre = jnp.dot(th, vw, preferred_element_type=jnp.float32) + vb
    return th, pre


def _mean_ce(pre, y_col):
    """mean_b( logsumexp(pre[b]) - pre[b, y[b]] ) — numerically stable."""
    B, C = pre.shape
    m = jnp.max(pre, axis=-1, keepdims=True)                    # (B, 1)
    lse = m[:, 0] + jnp.log(jnp.sum(jnp.exp(pre - m), axis=-1))  # (B,)
    cls = lax.broadcasted_iota(jnp.int32, (B, C), 1)
    picked = jnp.sum(jnp.where(cls == y_col, pre, 0.0), axis=-1)  # (B,)
    return jnp.mean(lse - picked)


# ---------------------------------------------------------------------------
# Kernels
# ---------------------------------------------------------------------------
def _infer_kernel(x_ref, a_ref, uww_ref, uwb_ref, vw_ref, vb_ref,
                  pre_ref, th_ref):
    th, pre = _cell_math(x_ref[...], a_ref[...], uww_ref[...], uwb_ref[...],
                         vw_ref[...], vb_ref[...])
    th_ref[...] = th.astype(th_ref.dtype)
    pre_ref[...] = pre.astype(pre_ref.dtype)


def _train_kernel(x_ref, a_ref, y_ref, uww_ref, uwb_ref, vw_ref, vb_ref,
                  loss_ref, th_ref):
    # Fused cell + CE loss: `pre` never leaves the kernel, loss goes to SMEM.
    th, pre = _cell_math(x_ref[...], a_ref[...], uww_ref[...], uwb_ref[...],
                         vw_ref[...], vb_ref[...])
    th_ref[...] = th.astype(th_ref.dtype)
    loss_ref[0, 0] = _mean_ce(pre, y_ref[...])


def _seq_train_kernel(x_ref, y_ref, a0_ref, uww_ref, uwb_ref, vw_ref, vb_ref,
                      loss_ref, h_ref, loss_acc):
    # Time loop inside the kernel: hidden state lives in the resident output
    # block `h_ref`; running loss sum lives in an SMEM scratch.
    t = pl.program_id(0)
    nt = pl.num_programs(0)

    @pl.when(t == 0)
    def _init():
        h_ref[...] = a0_ref[...]
        loss_acc[0, 0] = jnp.float32(0.0)

    th, pre = _cell_math(x_ref[0], h_ref[...], uww_ref[...], uwb_ref[...],
                         vw_ref[...], vb_ref[...])
    h_ref[...] = th.astype(h_ref.dtype)
    loss_acc[0, 0] = loss_acc[0, 0] + _mean_ce(pre, y_ref[0])

    @pl.when(t == nt - 1)
    def _finalize():
        loss_ref[0, 0] = loss_acc[0, 0] / nt


# ---------------------------------------------------------------------------
# Module-equivalent wrappers
# ---------------------------------------------------------------------------
def init_params(key, embedding_num, hidden_num, corpus_num):
    ks = jax.random.split(key, 6)

    def lin(kw, kb, fan_in, fan_out):
        bound = 1.0 / jnp.sqrt(jnp.float32(fan_in))
        w = jax.random.uniform(kw, (fan_in, fan_out), jnp.float32, -bound, bound)
        b = jax.random.uniform(kb, (1, fan_out), jnp.float32, -bound, bound)
        return w, b

    Uw, Ub = lin(ks[0], ks[1], embedding_num, hidden_num)
    Ww, Wb = lin(ks[2], ks[3], hidden_num, hidden_num)
    Vw, Vb = lin(ks[4], ks[5], hidden_num, corpus_num)
    # Merge U and W: h = tanh([x | a_prev] @ UWw + (Ub + Wb))  -- one MXU pass.
    return {
        "UWw": jnp.concatenate([Uw, Ww], axis=0),   # (E+H, H)
        "UWb": Ub + Wb,                             # (1, H)
        "Vw": Vw,                                   # (H, C)
        "Vb": Vb,                                   # (1, C)
    }


def rnn_cell_infer(params, x, a_prev):
    B, E = x.shape
    H = a_prev.shape[1]
    C = params["Vw"].shape[1]
    return pl.pallas_call(
        _infer_kernel,
        out_shape=(jax.ShapeDtypeStruct((B, C), jnp.float32),   # pre (logits)
                   jax.ShapeDtypeStruct((B, H), jnp.float32)),  # th  (new hidden)
        grid=(),
        in_specs=[_full0((B, E)), _full0((B, H)),
                  _full0((E + H, H)), _full0((1, H)),
                  _full0((H, C)), _full0((1, C))],
        out_specs=(_full0((B, C)), _full0((B, H))),
    )(x, a_prev, params["UWw"], params["UWb"], params["Vw"], params["Vb"])


def rnn_cell_train(params, x, a_prev, y):
    B, E = x.shape
    H = a_prev.shape[1]
    C = params["Vw"].shape[1]
    y2 = y.astype(jnp.int32).reshape(B, 1)
    loss, th = pl.pallas_call(
        _train_kernel,
        out_shape=(jax.ShapeDtypeStruct((1, 1), jnp.float32),   # loss (SMEM)
                   jax.ShapeDtypeStruct((B, H), jnp.float32)),  # th
        grid=(),
        in_specs=[_full0((B, E)), _full0((B, H)), _full0((B, 1)),
                  _full0((E + H, H)), _full0((1, H)),
                  _full0((H, C)), _full0((1, C))],
        out_specs=(_smem_scalar0(), _full0((B, H))),
    )(x, a_prev, y2, params["UWw"], params["UWb"], params["Vw"], params["Vb"])
    return loss[0, 0], th


def my_model_forward(params, x, a_prev, y=None):
    """Pallas equivalent of MyModel.forward: (loss, th) if y is given, else (pre, th)."""
    if y is not None:
        return rnn_cell_train(params, x, a_prev, y)
    return rnn_cell_infer(params, x, a_prev)


def rnn_seq_train(params, xs, ys, a0):
    """Run the cell over T timesteps inside ONE pallas_call.
    Returns (mean over timesteps of per-step mean CE loss, final hidden state)."""
    T, B, E = xs.shape
    H = a0.shape[1]
    C = params["Vw"].shape[1]
    ys2 = ys.astype(jnp.int32).reshape(T, B, 1)
    loss, hT = pl.pallas_call(
        _seq_train_kernel,
        out_shape=(jax.ShapeDtypeStruct((1, 1), jnp.float32),   # total loss (SMEM)
                   jax.ShapeDtypeStruct((B, H), jnp.float32)),  # final hidden
        grid=(T,),
        in_specs=[
            pl.BlockSpec((1, B, E), lambda t: (t, 0, 0)),       # x_t streamed
            pl.BlockSpec((1, B, 1), lambda t: (t, 0, 0)),       # y_t streamed
            _full1((B, H)),                                      # a0
            _full1((E + H, H)), _full1((1, H)),                  # merged U/W
            _full1((H, C)), _full1((1, C)),                      # V
        ],
        out_specs=(_smem_scalar1(),                              # loss
                   pl.BlockSpec((B, H), lambda t: (0, 0))),      # resident hidden
        scratch_shapes=[pltpu.SMEM((1, 1), jnp.float32)],        # running loss sum
        compiler_params=pltpu.CompilerParams(
            dimension_semantics=("arbitrary",)),                 # time is sequential
    )(xs, ys2, a0, params["UWw"], params["UWb"], params["Vw"], params["Vb"])
    return loss[0, 0], hT


# ---------------------------------------------------------------------------
if __name__ == "__main__":
    # batch B=8, embedding_num E=16, hidden_num H=32, corpus_num C=64, seq T=5
    B, E, H, C, T = 8, 16, 32, 64, 5

    key = jax.random.PRNGKey(0)
    kp, kx, ka, ky, kxs, kys = jax.random.split(key, 6)

    params = init_params(kp, E, H, C)
    x = jax.random.normal(kx, (B, E), jnp.float32)
    a_prev = jax.random.normal(ka, (B, H), jnp.float32)
    y = jax.random.randint(ky, (B,), 0, C, jnp.int32)

    # Inference path (y=None): returns (pre, th).
    pre, th = my_model_forward(params, x, a_prev)
    jax.block_until_ready((pre, th))

    # Training path: single fused cell + CE-loss kernel, returns (loss, th).
    loss, th2 = my_model_forward(params, x, a_prev, y)
    jax.block_until_ready((loss, th2))

    # Sequence path: T timesteps inside a single pallas_call.
    xs = jax.random.normal(kxs, (T, B, E), jnp.float32)
    ys = jax.random.randint(kys, (T, B), 0, C, jnp.int32)
    seq_loss, hT = rnn_seq_train(params, xs, ys, a_prev)
    jax.block_until_ready((seq_loss, hT))

    # ---- plain-JAX reference checks --------------------------------------
    xa = jnp.concatenate([x, a_prev], axis=-1)
    h_exp = jnp.tanh(xa @ params["UWw"] + params["UWb"])
    pre_exp = h_exp @ params["Vw"] + params["Vb"]
    lse = jax.scipy.special.logsumexp(pre_exp, axis=-1)
    loss_exp = jnp.mean(lse - pre_exp[jnp.arange(B), y])
    assert jnp.allclose(pre, pre_exp, atol=1e-5, rtol=1e-5)
    assert jnp.allclose(th, h_exp, atol=1e-5, rtol=1e-5)
    assert jnp.allclose(th2, h_exp, atol=1e-5, rtol=1e-5)
    assert jnp.allclose(loss, loss_exp, atol=1e-5, rtol=1e-5)

    h_run = a_prev
    step_losses = []
    for t in range(T):
        xa_t = jnp.concatenate([xs[t], h_run], axis=-1)
        h_run = jnp.tanh(xa_t @ params["UWw"] + params["UWb"])
        p_t = h_run @ params["Vw"] + params["Vb"]
        lse_t = jax.scipy.special.logsumexp(p_t, axis=-1)
        step_losses.append(jnp.mean(lse_t - p_t[jnp.arange(B), ys[t]]))
    seq_loss_exp = jnp.mean(jnp.stack(step_losses))
    assert jnp.allclose(hT, h_run, atol=1e-4, rtol=1e-4)
    assert jnp.allclose(seq_loss, seq_loss_exp, atol=1e-4, rtol=1e-4)

    print("KERNEL_OK")
</pallas_src>

<mosaic_0001>
module attributes {stable_mosaic.version = 11 : i64} {
  func.func @_infer_kernel(%arg0: memref<8x16xf32, #tpu.memory_space<vmem>>, %arg1: memref<8x32xf32, #tpu.memory_space<vmem>>, %arg2: memref<48x32xf32, #tpu.memory_space<vmem>>, %arg3: memref<1x32xf32, #tpu.memory_space<vmem>>, %arg4: memref<32x64xf32, #tpu.memory_space<vmem>>, %arg5: memref<1x64xf32, #tpu.memory_space<vmem>>, %arg6: memref<8x64xf32, #tpu.memory_space<vmem>>, %arg7: memref<8x32xf32, #tpu.memory_space<vmem>>) attributes {dimension_semantics = [], scalar_prefetch = 0 : i64, scratch_operands = 0 : i64, tpu.core_type = #tpu.core_type<tc>} {
    %c0 = arith.constant 0 : index
    %c0_0 = arith.constant 0 : index
    %0 = vector.load %arg0[%c0, %c0_0] : memref<8x16xf32, #tpu.memory_space<vmem>>, vector<8x16xf32>
    %c0_1 = arith.constant 0 : index
    %c0_2 = arith.constant 0 : index
    %1 = vector.load %arg1[%c0_1, %c0_2] : memref<8x32xf32, #tpu.memory_space<vmem>>, vector<8x32xf32>
    %c0_3 = arith.constant 0 : index
    %c0_4 = arith.constant 0 : index
    %2 = vector.load %arg2[%c0_3, %c0_4] : memref<48x32xf32, #tpu.memory_space<vmem>>, vector<48x32xf32>
    %c0_5 = arith.constant 0 : index
    %c0_6 = arith.constant 0 : index
    %3 = vector.load %arg3[%c0_5, %c0_6] : memref<1x32xf32, #tpu.memory_space<vmem>>, vector<1x32xf32>
    %c0_7 = arith.constant 0 : index
    %c0_8 = arith.constant 0 : index
    %4 = vector.load %arg4[%c0_7, %c0_8] : memref<32x64xf32, #tpu.memory_space<vmem>>, vector<32x64xf32>
    %c0_9 = arith.constant 0 : index
    %c0_10 = arith.constant 0 : index
    %5 = vector.load %arg5[%c0_9, %c0_10] : memref<1x64xf32, #tpu.memory_space<vmem>>, vector<1x64xf32>
    %6 = tpu.concatenate %0, %1 in 1 : vector<8x16xf32>, vector<8x32xf32> -> vector<8x48xf32>
    %cst = arith.constant dense<0.000000e+00> : vector<8x32xf32>
    %7 = tpu.matmul %6, %2, %cst {dimension_numbers = #tpu.dot_dimension_numbers<[1], [0], [0], [1], [0, 0, 1, 1], [], []>} : vector<8x48xf32>, vector<48x32xf32>, vector<8x32xf32> -> vector<8x32xf32>
    %8 = vector.broadcast %3 : vector<1x32xf32> to vector<8x32xf32>
    %9 = arith.addf %7, %8 : vector<8x32xf32>
    %10 = math.tanh %9 : vector<8x32xf32>
    %cst_11 = arith.constant dense<0.000000e+00> : vector<8x64xf32>
    %11 = tpu.matmul %10, %4, %cst_11 {dimension_numbers = #tpu.dot_dimension_numbers<[1], [0], [0], [1], [0, 0, 1, 1], [], []>} : vector<8x32xf32>, vector<32x64xf32>, vector<8x64xf32> -> vector<8x64xf32>
    %12 = vector.broadcast %5 : vector<1x64xf32> to vector<8x64xf32>
    %13 = arith.addf %11, %12 : vector<8x64xf32>
    %c0_12 = arith.constant 0 : index
    %c0_13 = arith.constant 0 : index
    %14 = vector.load %arg7[%c0_12, %c0_13] : memref<8x32xf32, #tpu.memory_space<vmem>>, vector<8x32xf32>
    tpu.vector_store %arg7[%c0_12, %c0_13], %10 {strides = array<i32>} : memref<8x32xf32, #tpu.memory_space<vmem>>, vector<8x32xf32>,
    %c0_14 = arith.constant 0 : index
    %c0_15 = arith.constant 0 : index
    %15 = vector.load %arg6[%c0_14, %c0_15] : memref<8x64xf32, #tpu.memory_space<vmem>>, vector<8x64xf32>
    tpu.vector_store %arg6[%c0_14, %c0_15], %13 {strides = array<i32>} : memref<8x64xf32, #tpu.memory_space<vmem>>, vector<8x64xf32>,
    return
  }
}

</mosaic_0001>

<llo_original>
// kernel: tpu_custom_call.1
$region0: #{tpu_custom_call.1}
  #allocation0 [shape = 'u32[]', space=smem, size = 0x4, offset = 0x4, fixed_abs, tag = 'smem constant byte address 0x4 - core index']
  #allocation1 [shape = 'u32[72,128]{1,0:T(1,128)}', space=vmem, size = 0x9000, scoped, tag = 'internal scratch']
  %s0 = inlined_call_operand.vmem [shape: f32[8,16], index: 0, kind: input, shape index: {}]
  %s1 = inlined_call_operand.vmem [shape: f32[8,32], index: 1, kind: input, shape index: {}]
  %s2 = inlined_call_operand.vmem [shape: f32[48,32], index: 2, kind: input, shape index: {}]
  %s3 = inlined_call_operand.vmem [shape: f32[1,32], index: 3, kind: input, shape index: {}]
  %s4 = inlined_call_operand.vmem [shape: f32[32,64], index: 4, kind: input, shape index: {}]
  %s5 = inlined_call_operand.vmem [shape: f32[1,64], index: 5, kind: input, shape index: {}]
  %s6 = inlined_call_operand.hbm [shape: f32[8,64], index: 6, kind: output, shape index: {0}]
  %s7 = inlined_call_operand.hbm [shape: f32[8,32], index: 7, kind: output, shape index: {1}]
  %8 = xla_tuple %s6, %s7
  %s9 = sld [smem:[#allocation0]]
  $region42: #{tpu_custom_call.1} parent=0
    _
  %s11 = ssub.s32 1, %s9
  %s12 = scalar_select 0, %s11, %s9
  $region1: #{tpu_custom_call.1} parent=0
    #allocation2 [shape = 'u8[4096]{0}', space=vmem, size = 0x1000, scoped, tag = 'output window, operand 0, single buffered']
    #allocation3 [shape = 's32[1]{0}', space=sflag, size = 0x4, scoped, tag = 'scoped memory for tpu_custom_call.1']
    #allocation4 [shape = 'u8[4096]{0}', space=vmem, size = 0x1000, scoped, tag = 'output window, operand 1, single buffered']
    #allocation5 [shape = 's32[1]{0}', space=sflag, size = 0x4, scoped, tag = 'scoped memory for tpu_custom_call.1']
    %13 = vsyncpa [#allocation3], 0
    %14 = vsyncpa [#allocation5], 0
    // Predicated region
    $region2: #{tpu_custom_call.1} parent=1 // pred_check
      _
    $region3: #{tpu_custom_call.1} parent=1 // pred_check_branch
      %16 = sbr.rel (0) target = $region5
    $region4: #{tpu_custom_call.1} parent=1 // pred_region
      _
    $region5: #{tpu_custom_call.1} parent=1 // pred_fallthru
      _
    // Predicated region
    $region6: #{tpu_custom_call.1} parent=1 // pred_check
      _
    $region7: #{tpu_custom_call.1} parent=1 // pred_check_branch
      %18 = sbr.rel (0) target = $region9
    $region8: #{tpu_custom_call.1} parent=1 // pred_region
      _
    $region9: #{tpu_custom_call.1} parent=1 // pred_fallthru
      _
    // Predicated region
    $region10: #{tpu_custom_call.1} parent=1 // pred_check
      _
    $region11: #{tpu_custom_call.1} parent=1 // pred_check_branch
      %20 = sbr.rel (0) target = $region13
    $region12: #{tpu_custom_call.1} parent=1 // pred_region
      _
    $region13: #{tpu_custom_call.1} parent=1 // pred_fallthru
      _
    // Predicated region
    $region14: #{tpu_custom_call.1} parent=1 // pred_check
      _
    $region15: #{tpu_custom_call.1} parent=1 // pred_check_branch
      %22 = sbr.rel (0) target = $region17
    $region16: #{tpu_custom_call.1} parent=1 // pred_region
      _
    $region17: #{tpu_custom_call.1} parent=1 // pred_fallthru
      _
    // Predicated region
    $region18: #{tpu_custom_call.1} parent=1 // pred_check
      _
    $region19: #{tpu_custom_call.1} parent=1 // pred_check_branch
      %24 = sbr.rel (0) target = $region21
    $region20: #{tpu_custom_call.1} parent=1 // pred_region
      _
    $region21: #{tpu_custom_call.1} parent=1 // pred_fallthru
      _
    // Predicated region
    $region22: #{tpu_custom_call.1} parent=1 // pred_check
      _
    $region23: #{tpu_custom_call.1} parent=1 // pred_check_branch
      %26 = sbr.rel (0) target = $region25
    $region24: #{tpu_custom_call.1} parent=1 // pred_region
      _
    $region25: #{tpu_custom_call.1} parent=1 // pred_fallthru
      _
    %v27 = vld [vmem:[%s0] sm:$0xff]
    %v28 = vld [vmem:[%s1] sm:$0xff]
    %v29 = vld [vmem:[%s2] sm:$0xff]
    %v30 = vld [vmem:[%s2 + $0x8] sm:$0xff]
    %v31 = vld [vmem:[%s2 + $0x10] sm:$0xff]
    %v32 = vld [vmem:[%s2 + $0x18] sm:$0xff]
    %v33 = vld [vmem:[%s2 + $0x20] sm:$0xff]
    %v34 = vld [vmem:[%s2 + $0x28] sm:$0xff]
    %v35 = vld [vmem:[%s3] sm:$0x1]
    %v36 = vld [vmem:[%s4] sm:$0xff]
    %v37 = vld [vmem:[%s4 + $0x8] sm:$0xff]
    %v38 = vld [vmem:[%s4 + $0x10] sm:$0xff]
    %v39 = vld [vmem:[%s4 + $0x18] sm:$0xff]
    %v40 = vld [vmem:[%s5] sm:$0x1]
    %42 = vrot.lane.b32.xlu0 %v28, 16
    %v43 = vpop.permute.xlu0 %42
    %vm45 = vcmask 130048
    %v46 = vsel %vm45, %v27, %v43
    %v48 = vperm.slane %v35, 0
    %vm50 = vcmask 392192
    %v52 = vsel %vm50, %v46, 0
    %54 = vmatpush.msra.mxu0 0.0
    %55 = vmatpush.msra.mxu0 0.0
    %56 = vmatpush.msra.mxu0 0.0
    %57 = vmatpush.msra.mxu0 0.0
    %58 = vmatpush.msra.mxu0 0.0
    %59 = vmatpush.msra.mxu0 0.0
    %60 = vmatpush.msra.mxu0 0.0
    %61 = vmatpush.msra.mxu0 0.0
    %62 = vmatpush.msra.mxu0 0.0
    %63 = vmatpush.msra.mxu0 0.0
    %64 = vmatpush.msra.mxu0 %v34
    %65 = vmatpush.msra.mxu0 %v33
    %66 = vmatpush.msra.mxu0 %v32
    %67 = vmatpush.msra.mxu0 %v31
    %68 = vmatpush.msra.mxu0 %v30
    %69 = vmatpush.msra.mxu0 %v29
    %70 = vmatmul.f32.gmra.mxu0 %v52
    %v71 = vpop.f32.mrf.mxu0
    %v72 = vadd.f32 %v48, %v71
    %73 = vdwg.mxu0
    %v74 = vtanh.pop %v72
    %v76 = vperm.slane %v40, 0
    %vm78 = vcmask 261120
    %v80 = vsel %vm78, %v74, 0
    %82 = vmatpush.msra.mxu0 0.0
    %83 = vmatpush.msra.mxu0 0.0
    %84 = vmatpush.msra.mxu0 0.0
    %85 = vmatpush.msra.mxu0 0.0
    %86 = vmatpush.msra.mxu0 0.0
    %87 = vmatpush.msra.mxu0 0.0
    %88 = vmatpush.msra.mxu0 0.0
    %89 = vmatpush.msra.mxu0 0.0
    %90 = vmatpush.msra.mxu0 0.0
    %91 = vmatpush.msra.mxu0 0.0
    %92 = vmatpush.msra.mxu0 0.0
    %93 = vmatpush.msra.mxu0 0.0
    %94 = vmatpush.msra.mxu0 %v39
    %95 = vmatpush.msra.mxu0 %v38
    %96 = vmatpush.msra.mxu0 %v37
    %97 = vmatpush.msra.mxu0 %v36
    %98 = vmatmul.f32.gmra.mxu0 %v80
    %v99 = vpop.f32.mrf.mxu0
    %v100 = vadd.f32 %v76, %v99
    %101 = vdwg.mxu0
    %102 = vst.msk [vmem:[#allocation4] sm:$0xff] %vm78, %v74
    %vm103 = vcmask 523264
    %104 = vst.msk [vmem:[#allocation2] sm:$0xff] %vm103, %v100
    // Predicated region
    $region26: #{tpu_custom_call.1} parent=1 // pred_check
      _
    $region27: #{tpu_custom_call.1} parent=1 // pred_check_branch
      %106 = sbr.rel (0) target = $region29
    $region28: #{tpu_custom_call.1} parent=1 // pred_region
      %108 = vsyncadd [#allocation3], 0
      %s110 = sshll.u32 [#allocation2], 4
      %s111 = int_to_ptr.vmem [resolvable:$true] %s110
      %s112 = sshll.u32 %s6, 4
      %s113 = int_to_ptr.hbm [resolvable:$true] %s112
      %115 = dma.vmem_to_hbm [thread:$0]  %s111, 128, %s113, [#allocation3]
    $region29: #{tpu_custom_call.1} parent=1 // pred_fallthru
      _
    // Predicated region
    $region30: #{tpu_custom_call.1} parent=1 // pred_check
      _
    $region31: #{tpu_custom_call.1} parent=1 // pred_check_branch
      %117 = sbr.rel (0) target = $region33
    $region32: #{tpu_custom_call.1} parent=1 // pred_region
      %119 = vsyncadd [#allocation5], 0
      %s121 = sshll.u32 [#allocation4], 4
      %s122 = int_to_ptr.vmem [resolvable:$true] %s121
      %s123 = sshll.u32 %s7, 4
      %s124 = int_to_ptr.hbm [resolvable:$true] %s123
      %126 = dma.vmem_to_hbm [thread:$0]  %s122, 128, %s124, [#allocation5]
    $region33: #{tpu_custom_call.1} parent=1 // pred_fallthru
      _
    // Predicated region
    $region34: #{tpu_custom_call.1} parent=1 // pred_check
      _
    $region35: #{tpu_custom_call.1} parent=1 // pred_check_branch
      %128 = sbr.rel (0) target = $region37
    $region36: #{tpu_custom_call.1} parent=1 // pred_region
      %130 = dma.done [#allocation3], 128
    $region37: #{tpu_custom_call.1} parent=1 // pred_fallthru
      _
    // Predicated region
    $region38: #{tpu_custom_call.1} parent=1 // pred_check
      _
    $region39: #{tpu_custom_call.1} parent=1 // pred_check_branch
      %132 = sbr.rel (0) target = $region41
    $region40: #{tpu_custom_call.1} parent=1 // pred_region
      %134 = dma.done [#allocation5], 128
    $region41: #{tpu_custom_call.1} parent=1 // pred_fallthru
      _
    %135 = vsyncpa [#allocation3], 1
    %136 = vsyncpa [#allocation5], 1

</llo_original>
